<compile_context>
chip_gen: v5e
topology: v5e:2x2
jax: 0.10.0
libtpu: 0.0.40
codegen_flags: <defaults>
</compile_context>

<pallas_src>
import jax
import jax.numpy as jnp
import numpy as np
from jax import lax
from jax.experimental import pallas as pl
from jax.experimental.pallas import tpu as pltpu


def _make_kernel(use_bf16_matmul):
    mm_dtype = jnp.bfloat16 if use_bf16_matmul else jnp.float32

    def kernel(inv_temp_ref, pos_bias_ref, neg_bias_ref, m_ref, a_ref, out_ref):
        """One batch block: m_ref/a_ref are (BB, T, D); bias tiles are (T, T)."""
        inv_temp = inv_temp_ref[0]                       # f32 scalar from SMEM

        m = m_ref[...].astype(jnp.float32)               # (BB, T, D)
        a = a_ref[...].astype(jnp.float32)

        # F.normalize(dim=-1, eps=1e-12) == x * rsqrt(max(sum(x^2), 1e-24)).
        # rsqrt runs on the EUP (essentially free next to the VPU work).
        # 1/temperature is folded into the motion scale: motion is an operand of
        # BOTH einsums, so this one small multiply scales both score directions
        # and the two (BB,T,T) `* inv_temp` multiplies disappear.
        m = m * (lax.rsqrt(jnp.maximum(jnp.sum(m * m, -1, keepdims=True), 1e-24))
                 * inv_temp)
        a = a * lax.rsqrt(jnp.maximum(jnp.sum(a * a, -1, keepdims=True), 1e-24))

        mq = m.astype(mm_dtype)
        aq = a.astype(mm_dtype)

        # Two batched MXU matmuls instead of one matmul + XLU transpose.  If a
        # bundle profile ever shows vmatmul as the saturating slot (very large
        # D), trade the second einsum for a transpose of s_ma instead.
        s_ma = jnp.einsum('btd,bud->btu', mq, aq,
                          preferred_element_type=jnp.float32)
        s_am = jnp.einsum('btd,bud->btu', aq, mq,
                          preferred_element_type=jnp.float32)

        pos_bias = pos_bias_ref[...]                     # (T, T), 0 / -inf
        neg_bias = neg_bias_ref[...]

        def direction(scores):
            pos_s = scores + pos_bias                    # broadcast over BB
            neg_s = scores + neg_bias
            max_pos = jnp.max(pos_s, axis=-1)            # (BB, T), always finite
            max_neg = jnp.max(neg_s, axis=-1)            # -inf when no negatives
            max_all = jnp.maximum(max_pos, max_neg)      # == max over full band
            shift = max_all[..., None]
            sum_pos = jnp.sum(jnp.exp(pos_s - shift), axis=-1)
            sum_neg = jnp.sum(jnp.exp(neg_s - shift), axis=-1)   # 0 if band empty
            # lse_all - lse_pos with a shared shift (the shift cancels exactly).
            # sum_pos >= exp(max_pos - max_all) > 0 for any sane temperature
            # (would underflow only if max_neg - max_pos > ~88, i.e. temp < ~0.02).
            loss = jnp.log(sum_pos + sum_neg) - jnp.log(sum_pos)
            # ">=" reproduces torch.argmax tie-breaking (positives listed first
            # in the reference, so ties count as correct).  Do NOT change to ">".
            corr = (max_pos >= max_neg).astype(jnp.float32)
            return loss, corr

        l_ma, c_ma = direction(s_ma)
        l_am, c_am = direction(s_am)

        # Merged full-tile store: channel 0 = loss partials, channel 1 = correct.
        out_ref[0, 0, :, :] = l_ma + l_am
        out_ref[0, 1, :, :] = c_ma + c_am

    return kernel


def _pick_block_b(B, T, D, vmem_budget_bytes=24 * 1024 * 1024, max_bb=64):
    """Largest divisor of B whose per-block VMEM footprint fits the budget.

    The default budget stays well under v7x's 64 MiB physical VMEM (per TC)
    with headroom for compiler scratch; raise it (together with
    vmem_limit_bytes) on v5e/v6e (128 MiB physical) if BB ends up too small.
    """
    # Per-batch-element f32 bytes:
    #   2 inputs x 2 pipeline buffers x T*D      (raw tiles)
    # + ~3 x T*D                                 (normalized f32 + bf16 copies)
    # + ~8 x T*T                                 (2 score mats + banded/exp temps)
    # + ~8 x T                                   (row stats + output buffers)
    per_b = 4 * (7 * T * D + 8 * T * T + 8 * T)
    fixed = 4 * 4 * T * T          # two (T, T) bias tiles, double-buffered
    cap = max(1, int((vmem_budget_bytes - fixed) // max(per_b, 1)))
    cap = min(cap, max_bb, B)
    if B >= 2:
        # v7x has 2 TensorCores: keep >= 2 grid steps on the parallel axis.
        cap = min(cap, max(1, B // 2))
    for bb in range(cap, 0, -1):
        if B % bb == 0:
            return bb
    return 1


def local_contrastive_loss(motion_feature, audio_feature, temperature=0.1,
                           learned_temp=None, block_b=None, use_bf16_matmul=None):
    """Pallas implementation of LocalContrastiveLoss.forward -> (loss, correct)."""
    assert motion_feature.ndim == 3, "expected (B, T, D)"
    assert motion_feature.shape == audio_feature.shape
    B, T, D = motion_feature.shape

    # learned_temp may be a traced JAX array (learned parameter): it is passed
    # through SMEM instead of being baked into the kernel as a Python constant.
    temp = learned_temp if learned_temp is not None else temperature
    inv_temp = (1.0 / jnp.asarray(temp, jnp.float32)).reshape((1,))

    # bf16 matmul operands only pay off when the MXU has real work (large D);
    # small D stays f32 for bit-tight fidelity (the kernel is VPU/XLU bound then).
    if use_bf16_matmul is None:
        use_bf16_matmul = D >= 128

    # Grid/batch-invariant band biases, built once in the wrapper:
    #   positives: [t-4, t+4) ∩ [0, T);  negatives: ([t-16, t+16) ∩ [0, T)) \ pos.
    t_idx = jnp.arange(T, dtype=jnp.int32)[:, None]
    u_idx = jnp.arange(T, dtype=jnp.int32)[None, :]
    pos_m = (u_idx >= t_idx - 4) & (u_idx < t_idx + 4)
    all_m = (u_idx >= t_idx - 16) & (u_idx < t_idx + 16)
    neg_m = all_m & jnp.logical_not(pos_m)
    neg_inf = jnp.float32(-jnp.inf)
    pos_bias = jnp.where(pos_m, jnp.float32(0.0), neg_inf)
    neg_bias = jnp.where(neg_m, jnp.float32(0.0), neg_inf)

    BB = block_b if block_b is not None else _pick_block_b(B, T, D)
    assert B % BB == 0
    NB = B // BB

    # TODO(synk): for T >> 128, add a query-time grid axis with a +/-16-key halo
    # so the score width shrinks from full T to (TQ + 32) keys per tile.

    out = pl.pallas_call(
        _make_kernel(use_bf16_matmul),
        out_shape=jax.ShapeDtypeStruct((NB, 2, BB, T), jnp.float32),
        grid_spec=pltpu.PrefetchScalarGridSpec(
            num_scalar_prefetch=0,
            grid=(NB,),
            in_specs=[
                pl.BlockSpec(memory_space=pltpu.MemorySpace.SMEM),   # inv_temp (1,)
                pl.BlockSpec((T, T), lambda nb: (0, 0)),             # pos_bias
                pl.BlockSpec((T, T), lambda nb: (0, 0)),             # neg_bias
                pl.BlockSpec((BB, T, D), lambda nb: (nb, 0, 0)),     # motion
                pl.BlockSpec((BB, T, D), lambda nb: (nb, 0, 0)),     # audio
            ],
            out_specs=pl.BlockSpec((1, 2, BB, T), lambda nb: (nb, 0, 0, 0)),
        ),
        compiler_params=pltpu.CompilerParams(
            dimension_semantics=("parallel",),
            vmem_limit_bytes=48 * 1024 * 1024),
    )(inv_temp, pos_bias, neg_bias, motion_feature, audio_feature)

    # final_loss = (m2a_meanB_sum_t + a2m_meanB_sum_t) / (2T)
    # correct    = total correct count / (2 * T * B)
    denom = 2.0 * T * B
    final_loss = jnp.sum(out[:, 0]) / denom
    total_correct = jnp.sum(out[:, 1]) / denom
    return final_loss, total_correct


def _reference(motion, audio, temperature):
    """Pure numpy replica of the PyTorch reference (for correctness check)."""
    B, T, D = motion.shape

    def normalize(x):
        n = np.sqrt((x * x).sum(-1, keepdims=True))
        return x / np.maximum(n, 1e-12)

    def lse(x, axis):
        mx = x.max(axis=axis, keepdims=True)
        return (mx + np.log(np.exp(x - mx).sum(axis=axis, keepdims=True))).squeeze(axis)

    m = normalize(motion.astype(np.float64))
    a = normalize(audio.astype(np.float64))
    total_loss = 0.0
    total_corr = 0.0
    for (q, kset) in ((m, a), (a, m)):
        for t in range(T):
            qt = q[:, t, :]
            start, end = max(0, t - 4), min(T, t + 4)
            ls, le = max(0, start - 12), start
            rs, re = end, min(T, end + 12)
            pos = kset[:, start:end, :]
            neg = np.concatenate([kset[:, ls:le, :], kset[:, rs:re, :]], axis=1)
            comb = np.concatenate([pos, neg], axis=1)
            logits = np.einsum("bd,bkd->bk", qt, comb) / temperature
            P = pos.shape[1]
            loss_t = -lse(logits[:, :P], 1) + lse(logits, 1)
            total_loss += loss_t.mean()
            amax = logits.argmax(axis=1)
            total_corr += float((amax < P).sum())
    return total_loss / (2 * T), total_corr / (2 * T * B)


if __name__ == "__main__":
    key = jax.random.PRNGKey(0)
    k1, k2, k3, k4 = jax.random.split(key, 4)

    # --- small shapes: f32 matmul path, tight tolerances ---------------------
    B, T, D = 2, 16, 32
    motion = jax.random.normal(k1, (B, T, D), dtype=jnp.float32)
    audio = jax.random.normal(k2, (B, T, D), dtype=jnp.float32)

    loss, correct = jax.block_until_ready(
        local_contrastive_loss(motion, audio, temperature=0.1))
    ref_loss, ref_corr = _reference(np.asarray(motion), np.asarray(audio), 0.1)
    assert abs(float(loss) - ref_loss) < 1e-3, (float(loss), ref_loss)
    assert abs(float(correct) - ref_corr) < 1e-4, (float(correct), ref_corr)

    # Learned (traced JAX array) temperature path: goes through SMEM.
    lt = jnp.float32(0.07)
    loss2, correct2 = jax.block_until_ready(
        local_contrastive_loss(motion, audio, learned_temp=lt))
    ref_loss2, ref_corr2 = _reference(np.asarray(motion), np.asarray(audio), 0.07)
    assert abs(float(loss2) - ref_loss2) < 1e-3, (float(loss2), ref_loss2)
    assert abs(float(correct2) - ref_corr2) < 1e-4, (float(correct2), ref_corr2)

    # --- larger shapes: bf16 MXU path (auto for D >= 128), loose tolerances ---
    B2, T2, D2 = 4, 64, 256
    motion_l = jax.random.normal(k3, (B2, T2, D2), dtype=jnp.float32)
    audio_l = jax.random.normal(k4, (B2, T2, D2), dtype=jnp.float32)
    loss3, correct3 = jax.block_until_ready(
        local_contrastive_loss(motion_l, audio_l, temperature=0.1))
    ref_loss3, ref_corr3 = _reference(np.asarray(motion_l), np.asarray(audio_l), 0.1)
    assert abs(float(loss3) - ref_loss3) < 3e-2, (float(loss3), ref_loss3)
    assert abs(float(correct3) - ref_corr3) < 3e-2, (float(correct3), ref_corr3)

    print("KERNEL_OK")
</pallas_src>

<mosaic_0001>
module attributes {stable_mosaic.version = 11 : i64} {
  func.func @kernel(%arg0: i32, %arg1: memref<1xf32, #tpu.memory_space<smem>>, %arg2: memref<16x16xf32, #tpu.memory_space<vmem>>, %arg3: memref<16x16xf32, #tpu.memory_space<vmem>>, %arg4: memref<1x16x32xf32, #tpu.memory_space<vmem>>, %arg5: memref<1x16x32xf32, #tpu.memory_space<vmem>>, %arg6: memref<1x2x1x16xf32, #tpu.memory_space<vmem>>) attributes {dimension_semantics = [#tpu.dimension_semantics<parallel>], iteration_bounds = array<i64: 2>, scalar_prefetch = 0 : i64, scratch_operands = 0 : i64, tpu.core_type = #tpu.core_type<tc>, window_params = [{transform_indices = @transform_0, window_bounds = array<i64: 1>}, {pipeline_mode = #tpu.pipeline_mode<synchronous>, transform_indices = @transform_1, window_bounds = array<i64: 16, 16>}, {pipeline_mode = #tpu.pipeline_mode<synchronous>, transform_indices = @transform_2, window_bounds = array<i64: 16, 16>}, {transform_indices = @transform_3, window_bounds = array<i64: 1, 16, 32>}, {transform_indices = @transform_4, window_bounds = array<i64: 1, 16, 32>}, {transform_indices = @transform_5, window_bounds = array<i64: 1, 2, 1, 16>}]} {
    %c0 = arith.constant 0 : index
    %0 = memref.load %arg1[%c0] : memref<1xf32, #tpu.memory_space<smem>>
    %c0_0 = arith.constant 0 : index
    %c0_1 = arith.constant 0 : index
    %c0_2 = arith.constant 0 : index
    %1 = vector.load %arg4[%c0_0, %c0_1, %c0_2] : memref<1x16x32xf32, #tpu.memory_space<vmem>>, vector<1x16x32xf32>
    %c0_3 = arith.constant 0 : index
    %c0_4 = arith.constant 0 : index
    %c0_5 = arith.constant 0 : index
    %2 = vector.load %arg5[%c0_3, %c0_4, %c0_5] : memref<1x16x32xf32, #tpu.memory_space<vmem>>, vector<1x16x32xf32>
    %3 = arith.mulf %1, %1 : vector<1x16x32xf32>
    %cst = arith.constant dense<0.000000e+00> : vector<1x16xf32>
    %4 = vector.multi_reduction <add>, %3, %cst [2] : vector<1x16x32xf32> to vector<1x16xf32>
    %5 = vector.shape_cast %4 : vector<1x16xf32> to vector<1x16x1xf32>
    %cst_6 = arith.constant 1.000000e-24 : f32
    %6 = vector.broadcast %cst_6 : f32 to vector<1x16x1xf32>
    %7 = arith.maximumf %5, %6 : vector<1x16x1xf32>
    %8 = math.rsqrt %7 : vector<1x16x1xf32>
    %9 = vector.broadcast %0 : f32 to vector<1x16x1xf32>
    %10 = arith.mulf %8, %9 : vector<1x16x1xf32>
    %11 = vector.broadcast %10 : vector<1x16x1xf32> to vector<1x16x32xf32>
    %12 = arith.mulf %1, %11 : vector<1x16x32xf32>
    %13 = arith.mulf %2, %2 : vector<1x16x32xf32>
    %cst_7 = arith.constant dense<0.000000e+00> : vector<1x16xf32>
    %14 = vector.multi_reduction <add>, %13, %cst_7 [2] : vector<1x16x32xf32> to vector<1x16xf32>
    %15 = vector.shape_cast %14 : vector<1x16xf32> to vector<1x16x1xf32>
    %cst_8 = arith.constant 1.000000e-24 : f32
    %16 = vector.broadcast %cst_8 : f32 to vector<1x16x1xf32>
    %17 = arith.maximumf %15, %16 : vector<1x16x1xf32>
    %18 = math.rsqrt %17 : vector<1x16x1xf32>
    %19 = vector.broadcast %18 : vector<1x16x1xf32> to vector<1x16x32xf32>
    %20 = arith.mulf %2, %19 : vector<1x16x32xf32>
    "tpu.trace_start"() <{level = 10 : i32, message = "btd,bud->btu"}> : () -> ()
    %cst_9 = arith.constant dense<0.000000e+00> : vector<1x16x16xf32>
    %21 = tpu.matmul %12, %20, %cst_9 {dimension_numbers = #tpu.dot_dimension_numbers<[2], [2], [1], [1], [0, 0, 0, 1, 1, 1], [0], [0]>} : vector<1x16x32xf32>, vector<1x16x32xf32>, vector<1x16x16xf32> -> vector<1x16x16xf32>
    %cst_10 = arith.constant dense<0.000000e+00> : vector<1x16x16xf32>
    %22 = tpu.matmul %20, %12, %cst_10 {dimension_numbers = #tpu.dot_dimension_numbers<[2], [2], [1], [1], [0, 0, 0, 1, 1, 1], [0], [0]>} : vector<1x16x32xf32>, vector<1x16x32xf32>, vector<1x16x16xf32> -> vector<1x16x16xf32>
    "tpu.trace_stop"() : () -> ()
    %c0_11 = arith.constant 0 : index
    %c0_12 = arith.constant 0 : index
    %23 = vector.load %arg2[%c0_11, %c0_12] : memref<16x16xf32, #tpu.memory_space<vmem>>, vector<16x16xf32>
    %c0_13 = arith.constant 0 : index
    %c0_14 = arith.constant 0 : index
    %24 = vector.load %arg3[%c0_13, %c0_14] : memref<16x16xf32, #tpu.memory_space<vmem>>, vector<16x16xf32>
    %25 = vector.shape_cast %23 : vector<16x16xf32> to vector<1x16x16xf32>
    %26 = arith.addf %21, %25 : vector<1x16x16xf32>
    %27 = vector.shape_cast %24 : vector<16x16xf32> to vector<1x16x16xf32>
    %28 = arith.addf %21, %27 : vector<1x16x16xf32>
    %cst_15 = arith.constant dense<0xFF800000> : vector<1x16xf32>
    %29 = vector.multi_reduction <maximumf>, %26, %cst_15 [2] : vector<1x16x16xf32> to vector<1x16xf32>
    %cst_16 = arith.constant dense<0xFF800000> : vector<1x16xf32>
    %30 = vector.multi_reduction <maximumf>, %28, %cst_16 [2] : vector<1x16x16xf32> to vector<1x16xf32>
    %31 = arith.maximumf %29, %30 : vector<1x16xf32>
    %32 = vector.shape_cast %31 : vector<1x16xf32> to vector<1x16x1xf32>
    %33 = vector.broadcast %32 : vector<1x16x1xf32> to vector<1x16x16xf32>
    %34 = arith.subf %26, %33 : vector<1x16x16xf32>
    %35 = math.exp %34 : vector<1x16x16xf32>
    %cst_17 = arith.constant dense<0.000000e+00> : vector<1x16xf32>
    %36 = vector.multi_reduction <add>, %35, %cst_17 [2] : vector<1x16x16xf32> to vector<1x16xf32>
    %37 = vector.broadcast %32 : vector<1x16x1xf32> to vector<1x16x16xf32>
    %38 = arith.subf %28, %37 : vector<1x16x16xf32>
    %39 = math.exp %38 : vector<1x16x16xf32>
    %cst_18 = arith.constant dense<0.000000e+00> : vector<1x16xf32>
    %40 = vector.multi_reduction <add>, %39, %cst_18 [2] : vector<1x16x16xf32> to vector<1x16xf32>
    %41 = arith.addf %36, %40 : vector<1x16xf32>
    %42 = math.log %41 : vector<1x16xf32>
    %43 = math.log %36 : vector<1x16xf32>
    %44 = arith.subf %42, %43 : vector<1x16xf32>
    %45 = arith.cmpf oge, %29, %30 : vector<1x16xf32>
    %46 = arith.extui %45 : vector<1x16xi1> to vector<1x16xi32>
    %47 = arith.sitofp %46 : vector<1x16xi32> to vector<1x16xf32>
    %48 = vector.shape_cast %23 : vector<16x16xf32> to vector<1x16x16xf32>
    %49 = arith.addf %22, %48 : vector<1x16x16xf32>
    %50 = vector.shape_cast %24 : vector<16x16xf32> to vector<1x16x16xf32>
    %51 = arith.addf %22, %50 : vector<1x16x16xf32>
    %cst_19 = arith.constant dense<0xFF800000> : vector<1x16xf32>
    %52 = vector.multi_reduction <maximumf>, %49, %cst_19 [2] : vector<1x16x16xf32> to vector<1x16xf32>
    %cst_20 = arith.constant dense<0xFF800000> : vector<1x16xf32>
    %53 = vector.multi_reduction <maximumf>, %51, %cst_20 [2] : vector<1x16x16xf32> to vector<1x16xf32>
    %54 = arith.maximumf %52, %53 : vector<1x16xf32>
    %55 = vector.shape_cast %54 : vector<1x16xf32> to vector<1x16x1xf32>
    %56 = vector.broadcast %55 : vector<1x16x1xf32> to vector<1x16x16xf32>
    %57 = arith.subf %49, %56 : vector<1x16x16xf32>
    %58 = math.exp %57 : vector<1x16x16xf32>
    %cst_21 = arith.constant dense<0.000000e+00> : vector<1x16xf32>
    %59 = vector.multi_reduction <add>, %58, %cst_21 [2] : vector<1x16x16xf32> to vector<1x16xf32>
    %60 = vector.broadcast %55 : vector<1x16x1xf32> to vector<1x16x16xf32>
    %61 = arith.subf %51, %60 : vector<1x16x16xf32>
    %62 = math.exp %61 : vector<1x16x16xf32>
    %cst_22 = arith.constant dense<0.000000e+00> : vector<1x16xf32>
    %63 = vector.multi_reduction <add>, %62, %cst_22 [2] : vector<1x16x16xf32> to vector<1x16xf32>
    %64 = arith.addf %59, %63 : vector<1x16xf32>
    %65 = math.log %64 : vector<1x16xf32>
    %66 = math.log %59 : vector<1x16xf32>
    %67 = arith.subf %65, %66 : vector<1x16xf32>
    %68 = arith.cmpf oge, %52, %53 : vector<1x16xf32>
    %69 = arith.extui %68 : vector<1x16xi1> to vector<1x16xi32>
    %70 = arith.sitofp %69 : vector<1x16xi32> to vector<1x16xf32>
    %71 = arith.addf %44, %67 : vector<1x16xf32>
    %c0_23 = arith.constant 0 : index
    %c0_24 = arith.constant 0 : index
    %c0_25 = arith.constant 0 : index
    %c0_26 = arith.constant 0 : index
    %72 = vector.load %arg6[%c0_23, %c0_24, %c0_25, %c0_26] : memref<1x2x1x16xf32, #tpu.memory_space<vmem>>, vector<1x1x1x16xf32>
    %73 = vector.shape_cast %72 : vector<1x1x1x16xf32> to vector<1x16xf32>
    %74 = vector.shape_cast %71 : vector<1x16xf32> to vector<1x1x1x16xf32>
    tpu.vector_store %arg6[%c0_23, %c0_24, %c0_25, %c0_26], %74 {strides = array<i32>} : memref<1x2x1x16xf32, #tpu.memory_space<vmem>>, vector<1x1x1x16xf32>,
    %75 = arith.addf %47, %70 : vector<1x16xf32>
    %c0_27 = arith.constant 0 : index
    %c1 = arith.constant 1 : index
    %c0_28 = arith.constant 0 : index
    %c0_29 = arith.constant 0 : index
    %76 = vector.load %arg6[%c0_27, %c1, %c0_28, %c0_29] : memref<1x2x1x16xf32, #tpu.memory_space<vmem>>, vector<1x1x1x16xf32>
    %77 = vector.shape_cast %76 : vector<1x1x1x16xf32> to vector<1x16xf32>
    %78 = vector.shape_cast %75 : vector<1x16xf32> to vector<1x1x1x16xf32>
    tpu.vector_store %arg6[%c0_27, %c1, %c0_28, %c0_29], %78 {strides = array<i32>} : memref<1x2x1x16xf32, #tpu.memory_space<vmem>>, vector<1x1x1x16xf32>,
    return
  }
  func.func @transform_0(%arg0: i32) -> i32 {
    %c0_i32 = arith.constant 0 : i32
    %c0_i32_0 = arith.constant 0 : i32
    return %c0_i32 : i32
  }
  func.func @transform_1(%arg0: i32) -> (i32, i32) {
    %c0_i32 = arith.constant 0 : i32
    %c0_i32_0 = arith.constant 0 : i32
    %c0_i32_1 = arith.constant 0 : i32
    return %c0_i32, %c0_i32_0 : i32, i32
  }
  func.func @transform_2(%arg0: i32) -> (i32, i32) {
    %c0_i32 = arith.constant 0 : i32
    %c0_i32_0 = arith.constant 0 : i32
    %c0_i32_1 = arith.constant 0 : i32
    return %c0_i32, %c0_i32_0 : i32, i32
  }
  func.func @transform_3(%arg0: i32) -> (i32, i32, i32) {
    %c0_i32 = arith.constant 0 : i32
    %c0_i32_0 = arith.constant 0 : i32
    %c0_i32_1 = arith.constant 0 : i32
    return %arg0, %c0_i32, %c0_i32_0 : i32, i32, i32
  }
  func.func @transform_4(%arg0: i32) -> (i32, i32, i32) {
    %c0_i32 = arith.constant 0 : i32
    %c0_i32_0 = arith.constant 0 : i32
    %c0_i32_1 = arith.constant 0 : i32
    return %arg0, %c0_i32, %c0_i32_0 : i32, i32, i32
  }
  func.func @transform_5(%arg0: i32) -> (i32, i32, i32, i32) {
    %c0_i32 = arith.constant 0 : i32
    %c0_i32_0 = arith.constant 0 : i32
    %c0_i32_1 = arith.constant 0 : i32
    %c0_i32_2 = arith.constant 0 : i32
    return %arg0, %c0_i32, %c0_i32_0, %c0_i32_1 : i32, i32, i32, i32
  }
}

</mosaic_0001>

<llo_original>
// kernel: tpu_custom_call.1
$region0: #{tpu_custom_call.1}
  #allocation0 [shape = 'u32[]', space=smem, size = 0x4, offset = 0x4, fixed_abs, tag = 'smem constant byte address 0x4 - core index']
  #allocation1 [shape = 'u32[72,128]{1,0:T(1,128)}', space=vmem, size = 0x9000, scoped, tag = 'internal scratch']
  #allocation2 [shape = 'f32[1]{0:T(128)S(6)}', space=smem, size = 0x200, scoped, tag = 'scoped memory for tpu_custom_call.1']
  %s0 = inlined_call_operand.<no memory space> [shape: f32[1], index: 0, kind: input, shape index: {}]
  %s1 = inlined_call_operand.hbm [shape: f32[16,16], index: 1, kind: input, shape index: {}]
  %s2 = inlined_call_operand.hbm [shape: f32[16,16], index: 2, kind: input, shape index: {}]
  %s3 = inlined_call_operand.hbm [shape: f32[2,16,32], index: 3, kind: input, shape index: {}]
  %s4 = inlined_call_operand.hbm [shape: f32[2,16,32], index: 4, kind: input, shape index: {}]
  %s5 = inlined_call_operand.hbm [shape: f32[2,2,1,16], index: 5, kind: output, shape index: {}]
  %s6 = sld [smem:[#allocation0]]
  $region69: #{tpu_custom_call.1} parent=0
    _
  %s8 = ssub.s32 1, %s6
  %s9 = scalar_select 0, %s8, %s6
  %10 = sst [smem:[#allocation2]] %s0
  $region1: #{tpu_custom_call.1} parent=0
    #allocation3 [shape = 'u8[8192]{0}', space=vmem, size = 0x2000, scoped, tag = 'input window, operand 1, single buffered']
    #allocation4 [shape = 's32[2]{0}', space=sflag, size = 0x8, scoped, tag = 'scoped memory for tpu_custom_call.1']
    #allocation5 [shape = 's32[2]{0}', space=sflag, size = 0x8, scoped, tag = 'scoped memory for tpu_custom_call.1']
    #allocation6 [shape = 'u8[8192]{0}', space=vmem, size = 0x2000, scoped, tag = 'input window, operand 2, single buffered']
    #allocation7 [shape = 's32[1]{0}', space=sflag, size = 0x4, scoped, tag = 'scoped memory for tpu_custom_call.1']
    #allocation8 [shape = 'u8[16384]{0}', space=vmem, size = 0x4000, scoped, tag = 'input window, operand 3']
    #allocation9 [shape = 'u8[16384]{0}', space=vmem, size = 0x4000, scoped, tag = 'input window, operand 4']
    #allocation10 [shape = 'u8[2048]{0}', space=vmem, size = 0x800, scoped, tag = 'output window, operand 0']
    %11 = vsyncpa [#allocation4], 0
    %12 = vsyncpa [#allocation7], 0
    %13 = vsyncpa [#allocation5], 0
    %s14 = scalar_lea.sflag [#allocation5], 1
    %15 = vsyncpa %s14, 0
    loop: start=0, step=1, limit=4
    $region2: #{tpu_custom_call.1} parent=1 // loop_pre_header
      _
    $region3: #{tpu_custom_call.1} parent=1 // loop_header
      %s17 = sphi 0, %s21
      %p18 = scmp.ge.s32.totalorder %s17, 4
      %s25 = sphi 0, %s25
      %s27 = sphi 0, %s25
      %s28 = sphi 0, %s27
      %s42 = sphi 0, %s28
      %s46 = sphi 0, %s46
      %s48 = sphi 0, %s46
      %s49 = sphi 0, %s48
      %s63 = sphi 0, %s49
      %s67 = sphi 0, %s67
      %s69 = sphi 0, %s67
      %s70 = sphi 0, %s69
      %s84 = sphi 0, %s70
      %s90 = sphi 0, %s92
      %s93 = sphi 0, %s90
      %s94 = sphi 0, %s93
      %s110 = sphi 0, %s94
      %s116 = sphi 0, %s118
      %s119 = sphi 0, %s116
      %s120 = sphi 0, %s119
      %s136 = sphi 0, %s120
      %s142 = sphi 0, %s144
      %s145 = sphi 0, %s142
      %s146 = sphi 0, %s145
      %s162 = sphi 0, %s146
    $region4: #{tpu_custom_call.1} parent=1 // loop_header_branch
      %20 = sbr.rel (%p18) target = $region8
    $region5: #{tpu_custom_call.1} parent=1 // loop_body
      %s22 = ssub.s32 %s17, 1
      %s23 = ssub.s32 %s17, 2
      %s24 = sadd.s32 %s17, 1
      %s26 = sadd.s32 %s25, 1
      %p29 = scmp.eq.s32.totalorder %s17, 1
      %p30 = scmp.ne.s32.totalorder %s25, %s27
      %p31 = scmp.eq.s32.totalorder %s17, 0
      %p32 = por %p30, %p31
      %p33 = scmp.ne.s32.totalorder %s25, %s27
      %p34 = scmp.eq.s32.totalorder %s22, 1
      %p35 = por %p33, %p34
      %p36 = scmp.ne.s32.totalorder %s27, %s28
      %p37 = scmp.eq.s32.totalorder %s22, 0
      %p38 = por %p36, %p37
      %p39 = scmp.ne.s32.totalorder %s27, %s28
      %p40 = scmp.eq.s32.totalorder %s23, 1
      %p41 = por %p39, %p40
      %p43 = scmp.ne.s32.totalorder %s28, %s42
      %p44 = scmp.eq.s32.totalorder %s23, 0
      %p45 = por %p43, %p44
      %s47 = sadd.s32 %s46, 1
      %p50 = scmp.eq.s32.totalorder %s17, 1
      %p51 = scmp.ne.s32.totalorder %s46, %s48
      %p52 = scmp.eq.s32.totalorder %s17, 0
      %p53 = por %p51, %p52
      %p54 = scmp.ne.s32.totalorder %s46, %s48
      %p55 = scmp.eq.s32.totalorder %s22, 1
      %p56 = por %p54, %p55
      %p57 = scmp.ne.s32.totalorder %s48, %s49
      %p58 = scmp.eq.s32.totalorder %s22, 0
      %p59 = por %p57, %p58
      %p60 = scmp.ne.s32.totalorder %s48, %s49
      %p61 = scmp.eq.s32.totalorder %s23, 1
      %p62 = por %p60, %p61
      %p64 = scmp.ne.s32.totalorder %s49, %s63
      %p65 = scmp.eq.s32.totalorder %s23, 0
      %p66 = por %p64, %p65
      %s68 = sadd.s32 %s67, 1
      %p71 = scmp.eq.s32.totalorder %s17, 1
      %p72 = scmp.ne.s32.totalorder %s67, %s69
      %p73 = scmp.eq.s32.totalorder %s17, 0
      %p74 = por %p72, %p73
      %p75 = scmp.ne.s32.totalorder %s67, %s69
      %p76 = scmp.eq.s32.totalorder %s22, 1
      %p77 = por %p75, %p76
      %p78 = scmp.ne.s32.totalorder %s69, %s70
      %p79 = scmp.eq.s32.totalorder %s22, 0
      %p80 = por %p78, %p79
      %p81 = scmp.ne.s32.totalorder %s69, %s70
      %p82 = scmp.eq.s32.totalorder %s23, 1
      %p83 = por %p81, %p82
      %p85 = scmp.ne.s32.totalorder %s70, %s84
      %p86 = scmp.eq.s32.totalorder %s23, 0
      %p87 = por %p85, %p86
      %s88 = ssub.s32 %s17, %s24
      %p89 = scmp.eq.s32.totalorder %s88, 0
      %s91 = sadd.s32 %s90, 1
      %s92 = scalar_select %p89, %s90, %s91
      %p95 = pneg %p89
      %p96 = scmp.eq.s32.totalorder %s17, 1
      %p97 = por %p95, %p96
      %p98 = scmp.ne.s32.totalorder %s90, %s93
      %p99 = scmp.eq.s32.totalorder %s17, 0
      %p100 = por %p98, %p99
      %p101 = scmp.ne.s32.totalorder %s90, %s93
      %p102 = scmp.eq.s32.totalorder %s22, 1
      %p103 = por %p101, %p102
      %p104 = scmp.ne.s32.totalorder %s93, %s94
      %p105 = scmp.eq.s32.totalorder %s22, 0
      %p106 = por %p104, %p105
      %p107 = scmp.ne.s32.totalorder %s93, %s94
      %p108 = scmp.eq.s32.totalorder %s23, 1
      %p109 = por %p107, %p108
      %p111 = scmp.ne.s32.totalorder %s94, %s110
      %p112 = scmp.eq.s32.totalorder %s23, 0
      %p113 = por %p111, %p112
      %s114 = ssub.s32 %s17, %s24
      %p115 = scmp.eq.s32.totalorder %s114, 0
      %s117 = sadd.s32 %s116, 1
      %s118 = scalar_select %p115, %s116, %s117
      %p121 = pneg %p115
      %p122 = scmp.eq.s32.totalorder %s17, 1
      %p123 = por %p121, %p122
      %p124 = scmp.ne.s32.totalorder %s116, %s119
      %p125 = scmp.eq.s32.totalorder %s17, 0
      %p126 = por %p124, %p125
      %p127 = scmp.ne.s32.totalorder %s116, %s119
      %p128 = scmp.eq.s32.totalorder %s22, 1
      %p129 = por %p127, %p128
      %p130 = scmp.ne.s32.totalorder %s119, %s120
      %p131 = scmp.eq.s32.totalorder %s22, 0
      %p132 = por %p130, %p131
      %p133 = scmp.ne.s32.totalorder %s119, %s120
      %p134 = scmp.eq.s32.totalorder %s23, 1
      %p135 = por %p133, %p134
      %p137 = scmp.ne.s32.totalorder %s120, %s136
      %p138 = scmp.eq.s32.totalorder %s23, 0
      %p139 = por %p137, %p138
      %s140 = ssub.s32 %s17, %s24
      %p141 = scmp.eq.s32.totalorder %s140, 0
      %s143 = sadd.s32 %s142, 1
      %s144 = scalar_select %p141, %s142, %s143
      %p147 = pneg %p141
      %p148 = scmp.eq.s32.totalorder %s17, 1
      %p149 = por %p147, %p148
      %p150 = scmp.ne.s32.totalorder %s142, %s145
      %p151 = scmp.eq.s32.totalorder %s17, 0
      %p152 = por %p150, %p151
      %p153 = scmp.ne.s32.totalorder %s142, %s145
      %p154 = scmp.eq.s32.totalorder %s22, 1
      %p155 = por %p153, %p154
      %p156 = scmp.ne.s32.totalorder %s145, %s146
      %p157 = scmp.eq.s32.totalorder %s22, 0
      %p158 = por %p156, %p157
      %p159 = scmp.ne.s32.totalorder %s145, %s146
      %p160 = scmp.eq.s32.totalorder %s23, 1
      %p161 = por %p159, %p160
      %p163 = scmp.ne.s32.totalorder %s146, %s162
      %p164 = scmp.eq.s32.totalorder %s23, 0
      %p165 = por %p163, %p164
      %p166 = scmp.le.s32.totalorder 1, %s17
      %p167 = scmp.lt.s32.totalorder %s17, 3
      %p168 = pnand %p166, %p167
      %p169 = pneg %p168
      // Predicated region
      $region9: #{tpu_custom_call.1} parent=5 // pred_check
        _
      $region10: #{tpu_custom_call.1} parent=5 // pred_check_branch
        %171 = sbr.rel (%p168) target = $region12
      $region11: #{tpu_custom_call.1} parent=5 // pred_region
        %s172 = ssub.s32 %s17, 1
        // Predicated region
        $region13: #{tpu_custom_call.1} parent=11 // pred_check
          %p173 = pneg %p38
        $region14: #{tpu_custom_call.1} parent=11 // pred_check_branch
          %175 = sbr.rel (%p173) target = $region16
        $region15: #{tpu_custom_call.1} parent=11 // pred_region
          _
        $region16: #{tpu_custom_call.1} parent=11 // pred_fallthru
          _
        // Predicated region
        $region17: #{tpu_custom_call.1} parent=11 // pred_check
          %p176 = pneg %p59
        $region18: #{tpu_custom_call.1} parent=11 // pred_check_branch
          %178 = sbr.rel (%p176) target = $region20
        $region19: #{tpu_custom_call.1} parent=11 // pred_region
          %180 = vsyncadd [#allocation4], 0
          %s181 = sshll.u32 %s1, 4
          %s182 = int_to_ptr.hbm [resolvable:$true] %s181
          %s183 = sshll.u32 [#allocation3], 4
          %s184 = int_to_ptr.vmem [resolvable:$true] %s183
          %189 = dma.hbm_to_vmem [thread:$0]  %s182, 256, %s184, [#allocation4], 128, 128, 8
        $region20: #{tpu_custom_call.1} parent=11 // pred_fallthru
          _
        // Predicated region
        $region21: #{tpu_custom_call.1} parent=11 // pred_check
          %p190 = pneg %p80
        $region22: #{tpu_custom_call.1} parent=11 // pred_check_branch
          %192 = sbr.rel (%p190) target = $region24
        $region23: #{tpu_custom_call.1} parent=11 // pred_region
          %194 = vsyncadd [#allocation7], 0
          %s195 = sshll.u32 %s2, 4
          %s196 = int_to_ptr.hbm [resolvable:$true] %s195
          %s197 = sshll.u32 [#allocation6], 4
          %s198 = int_to_ptr.vmem [resolvable:$true] %s197
          %203 = dma.hbm_to_vmem [thread:$0]  %s196, 256, %s198, [#allocation7], 128, 128, 8
        $region24: #{tpu_custom_call.1} parent=11 // pred_fallthru
          _
      $region12: #{tpu_custom_call.1} parent=5 // pred_fallthru
        _
      %p204 = scmp.lt.s32.totalorder %s17, 2
      // Predicated region
      $region25: #{tpu_custom_call.1} parent=5 // pred_check
        %p205 = pneg %p204
      $region26: #{tpu_custom_call.1} parent=5 // pred_check_branch
        %207 = sbr.rel (%p205) target = $region28
      $region27: #{tpu_custom_call.1} parent=5 // pred_region
        // Predicated region
        $region29: #{tpu_custom_call.1} parent=27 // pred_check
          %p208 = pneg %p100
        $region30: #{tpu_custom_call.1} parent=27 // pred_check_branch
          %210 = sbr.rel (%p208) target = $region32
        $region31: #{tpu_custom_call.1} parent=27 // pred_region
          %s211 = sand.u32 %s17, 1
          %s212 = scalar_lea.sflag [#allocation4], %s211
          %s213 = sand.u32 %s90, 1
          %s214 = smul.addr %s213, 16
          %s215 = scalar_lea.vmem [#allocation8], %s214
          %217 = vsyncadd %s212, 0
          %s218 = smul.addr %s17, 2
          %s219 = smul.addr %s218, 8
          %s220 = scalar_lea.hbm %s3, %s219
          %s221 = sshll.u32 %s220, 4
          %s222 = int_to_ptr.hbm [resolvable:$true] %s221
          %s223 = sshll.u32 %s215, 4
          %s224 = int_to_ptr.vmem [resolvable:$true] %s223
          %229 = dma.hbm_to_vmem [thread:$0]  %s222, 256, %s224, %s212, 128, 128, 8
        $region32: #{tpu_custom_call.1} parent=27 // pred_fallthru
          _
        // Predicated region
        $region33: #{tpu_custom_call.1} parent=27 // pred_check
          %p230 = pneg %p126
        $region34: #{tpu_custom_call.1} parent=27 // pred_check_branch
          %232 = sbr.rel (%p230) target = $region36
        $region35: #{tpu_custom_call.1} parent=27 // pred_region
          %s233 = sand.u32 %s17, 1
          %s234 = scalar_lea.sflag [#allocation4], %s233
          %s235 = sand.u32 %s116, 1
          %s236 = smul.addr %s235, 16
          %s237 = scalar_lea.vmem [#allocation9], %s236
          %239 = vsyncadd %s234, 0
          %s240 = smul.addr %s17, 2
          %s241 = smul.addr %s240, 8
          %s242 = scalar_lea.hbm %s4, %s241
          %s243 = sshll.u32 %s242, 4
          %s244 = int_to_ptr.hbm [resolvable:$true] %s243
          %s245 = sshll.u32 %s237, 4
          %s246 = int_to_ptr.vmem [resolvable:$true] %s245
          %251 = dma.hbm_to_vmem [thread:$0]  %s244, 256, %s246, %s234, 128, 128, 8
        $region36: #{tpu_custom_call.1} parent=27 // pred_fallthru
          _
      $region28: #{tpu_custom_call.1} parent=5 // pred_fallthru
        _
      %p252 = scmp.le.s32.totalorder 1, %s17
      %p253 = scmp.lt.s32.totalorder %s17, 3
      %p254 = pnand %p252, %p253
      %p255 = pneg %p254
      // Predicated region
      $region37: #{tpu_custom_call.1} parent=5 // pred_check
        _
      $region38: #{tpu_custom_call.1} parent=5 // pred_check_branch
        %257 = sbr.rel (%p254) target = $region40
      $region39: #{tpu_custom_call.1} parent=5 // pred_region
        %s258 = ssub.s32 %s17, 1
        // Predicated region
        $region41: #{tpu_custom_call.1} parent=39 // pred_check
          %p259 = pneg %p59
        $region42: #{tpu_custom_call.1} parent=39 // pred_check_branch
          %261 = sbr.rel (%p259) target = $region44
        $region43: #{tpu_custom_call.1} parent=39 // pred_region
          %263 = dma.done [#allocation4], 256
        $region44: #{tpu_custom_call.1} parent=39 // pred_fallthru
          _
        // Predicated region
        $region45: #{tpu_custom_call.1} parent=39 // pred_check
          %p264 = pneg %p80
        $region46: #{tpu_custom_call.1} parent=39 // pred_check_branch
          %266 = sbr.rel (%p264) target = $region48
        $region47: #{tpu_custom_call.1} parent=39 // pred_region
          %268 = dma.done [#allocation7], 256
        $region48: #{tpu_custom_call.1} parent=39 // pred_fallthru
          _
        %s269 = sand.u32 %s22, 1
        %s270 = scalar_lea.sflag [#allocation4], %s269
        %s271 = sand.u32 %s93, 1
        %s272 = smul.addr %s271, 16
        %s273 = scalar_lea.vmem [#allocation8], %s272
        // Predicated region
        $region49: #{tpu_custom_call.1} parent=39 // pred_check
          %p274 = pneg %p106
        $region50: #{tpu_custom_call.1} parent=39 // pred_check_branch
          %276 = sbr.rel (%p274) target = $region52
        $region51: #{tpu_custom_call.1} parent=39 // pred_region
          %278 = dma.done %s270, 256
        $region52: #{tpu_custom_call.1} parent=39 // pred_fallthru
          _
        %s279 = sand.u32 %s22, 1
        %s280 = scalar_lea.sflag [#allocation4], %s279
        %s281 = sand.u32 %s119, 1
        %s282 = smul.addr %s281, 16
        %s283 = scalar_lea.vmem [#allocation9], %s282
        // Predicated region
        $region53: #{tpu_custom_call.1} parent=39 // pred_check
          %p284 = pneg %p132
        $region54: #{tpu_custom_call.1} parent=39 // pred_check_branch
          %286 = sbr.rel (%p284) target = $region56
        $region55: #{tpu_custom_call.1} parent=39 // pred_region
          %288 = dma.done %s280, 256
        $region56: #{tpu_custom_call.1} parent=39 // pred_fallthru
          _
        %p289 = pneg %p38
        %p290 = pneg %p35
        %p291 = pneg %p59
        %p292 = pneg %p56
        %p293 = pneg %p80
        %p294 = pneg %p77
        %s295 = sand.u32 %s22, 1
        %s296 = scalar_lea.sflag [#allocation4], %s295
        %s297 = sand.u32 %s93, 1
        %s298 = smul.addr %s297, 16
        %s299 = scalar_lea.vmem [#allocation8], %s298
        %p300 = pneg %p106
        %p301 = pneg %p103
        %s302 = sand.u32 %s22, 1
        %s303 = scalar_lea.sflag [#allocation4], %s302
        %s304 = sand.u32 %s119, 1
        %s305 = smul.addr %s304, 16
        %s306 = scalar_lea.vmem [#allocation9], %s305
        %p307 = pneg %p132
        %p308 = pneg %p129
        %p309 = pneg %p158
        %p310 = pneg %p155
        %s311 = sand.u32 %s145, 1
        %s312 = scalar_lea.sflag [#allocation5], %s311
        %s313 = sand.u32 %s145, 1
        %s314 = smul.addr %s313, 2
        %s315 = scalar_lea.vmem [#allocation10], %s314
        %s316 = sld [smem:[#allocation2]]
        %v317 = vld [vmem:[%s273] sm:$0xff]
        %v318 = vld [vmem:[%s273 + $0x8] sm:$0xff]
        %v319 = vld [vmem:[%s283] sm:$0xff]
        %v320 = vld [vmem:[%s283 + $0x8] sm:$0xff]
        %v321 = vmul.f32 %v317, %v317
        %v322 = vmul.f32 %v318, %v318
        %vm323 = vcmask 261120
        %v324 = vsel %vm323, %v321, 0.0
        %325 = vadd.xlane.f32.xlu0 %v324
        %v326 = vpop.xlane.xlu0 %325
        %v327 = vsel %vm323, %v322, 0.0
        %328 = vadd.xlane.f32.xlu0 %v327
        %v329 = vpop.xlane.xlu0 %328
        %v330 = vmax.f32 %v326, 1e-24
        %v331 = vmax.f32 %v329, 1e-24
        %v332 = vrsqrt.pop %v330
        %v333 = vmul.f32 %v332, %v330
        %v334 = vmul.f32 %v333, %v332
        %v335 = vmul.f32 0.5, %v334
        %v336 = vsub.f32 1.5, %v335
        %v337 = vmul.f32 %v332, %v336
        %vm338 = vweird.f32 %v330
        %vm339 = vweird.f32 %v332
        %vm340 = vmor %vm338, %vm339
        %v341 = vsel %vm340, %v332, %v337
        %v342 = vrsqrt.pop %v331
        %v343 = vmul.f32 %v342, %v331
        %v344 = vmul.f32 %v343, %v342
        %v345 = vmul.f32 0.5, %v344
        %v346 = vsub.f32 1.5, %v345
        %v347 = vmul.f32 %v342, %v346
        %vm348 = vweird.f32 %v331
        %vm349 = vweird.f32 %v342
        %vm350 = vmor %vm348, %vm349
        %v351 = vsel %vm350, %v342, %v347
        %v352 = vstv %s316
        %v353 = vmul.f32 %v341, %v352
        %v354 = vmul.f32 %v351, %v352
        %v355 = vmul.f32 %v317, %v353
        %v356 = vmul.f32 %v318, %v354
        %v357 = vmul.f32 %v319, %v319
        %v358 = vmul.f32 %v320, %v320
        %v359 = vsel %vm323, %v357, 0.0
        %360 = vadd.xlane.f32.xlu0 %v359
        %v361 = vpop.xlane.xlu0 %360
        %v362 = vsel %vm323, %v358, 0.0
        %363 = vadd.xlane.f32.xlu0 %v362
        %v364 = vpop.xlane.xlu0 %363
        %v365 = vmax.f32 %v361, 1e-24
        %v366 = vmax.f32 %v364, 1e-24
        %v367 = vrsqrt.pop %v365
        %v368 = vmul.f32 %v367, %v365
        %v369 = vmul.f32 %v368, %v367
        %v370 = vmul.f32 0.5, %v369
        %v371 = vsub.f32 1.5, %v370
        %v372 = vmul.f32 %v367, %v371
        %vm373 = vweird.f32 %v365
        %vm374 = vweird.f32 %v367
        %vm375 = vmor %vm373, %vm374
        %v376 = vsel %vm375, %v367, %v372
        %v377 = vrsqrt.pop %v366
        %v378 = vmul.f32 %v377, %v366
        %v379 = vmul.f32 %v378, %v377
        %v380 = vmul.f32 0.5, %v379
        %v381 = vsub.f32 1.5, %v380
        %v382 = vmul.f32 %v377, %v381
        %vm383 = vweird.f32 %v366
        %vm384 = vweird.f32 %v377
        %vm385 = vmor %vm383, %vm384
        %v386 = vsel %vm385, %v377, %v382
        %v387 = vmul.f32 %v319, %v376
        %v388 = vmul.f32 %v320, %v386
        %v390 = vsel %vm323, %v355, 0
        %v393 = vsel %vm323, %v356, 0
        %v396 = vsel %vm323, %v387, 0
        %v399 = vsel %vm323, %v388, 0
        %401 = vmatpush.xpose.msra.mxu0 0.0
        %402 = vmatpush.xpose.msra.mxu0 0.0
        %403 = vmatpush.xpose.msra.mxu0 0.0
        %404 = vmatpush.xpose.msra.mxu0 0.0
        %405 = vmatpush.xpose.msra.mxu0 0.0
        %406 = vmatpush.xpose.msra.mxu0 0.0
        %407 = vmatpush.xpose.msra.mxu0 0.0
        %408 = vmatpush.xpose.msra.mxu0 0.0
        %409 = vmatpush.xpose.msra.mxu0 0.0
        %410 = vmatpush.xpose.msra.mxu0 0.0
        %411 = vmatpush.xpose.msra.mxu0 0.0
        %412 = vmatpush.xpose.msra.mxu0 0.0
        %413 = vmatpush.xpose.msra.mxu0 0.0
        %414 = vmatpush.xpose.msra.mxu0 0.0
        %415 = vmatpush.xpose.msra.mxu0 %v399
        %416 = vmatpush.xpose.msra.mxu0 %v396
        %417 = vmatmul.f32.gmra.mxu0 %v390
        %v418 = vpop.f32.mrf.mxu0
        %v419 = vadd.f32 0.0, %v418
        %420 = vmatmul.f32.gmra.mxu0 %v393
        %v421 = vpop.f32.mrf.mxu0
        %v422 = vadd.f32 0.0, %v421
        %423 = vdwg.mxu0
        %424 = vmatpush.xpose.msra.mxu0 0.0
        %425 = vmatpush.xpose.msra.mxu0 0.0
        %426 = vmatpush.xpose.msra.mxu0 0.0
        %427 = vmatpush.xpose.msra.mxu0 0.0
        %428 = vmatpush.xpose.msra.mxu0 0.0
        %429 = vmatpush.xpose.msra.mxu0 0.0
        %430 = vmatpush.xpose.msra.mxu0 0.0
        %431 = vmatpush.xpose.msra.mxu0 0.0
        %432 = vmatpush.xpose.msra.mxu0 0.0
        %433 = vmatpush.xpose.msra.mxu0 0.0
        %434 = vmatpush.xpose.msra.mxu0 0.0
        %435 = vmatpush.xpose.msra.mxu0 0.0
        %436 = vmatpush.xpose.msra.mxu0 0.0
        %437 = vmatpush.xpose.msra.mxu0 0.0
        %438 = vmatpush.xpose.msra.mxu0 %v393
        %439 = vmatpush.xpose.msra.mxu0 %v390
        %440 = vmatmul.f32.gmra.mxu0 %v396
        %v441 = vpop.f32.mrf.mxu0
        %v442 = vadd.f32 0.0, %v441
        %443 = vmatmul.f32.gmra.mxu0 %v399
        %v444 = vpop.f32.mrf.mxu0
        %v445 = vadd.f32 0.0, %v444
        %446 = vdwg.mxu0
        %v447 = vld [vmem:[#allocation3] sm:$0xff]
        %v448 = vld [vmem:[#allocation3 + $0x8] sm:$0xff]
        %v449 = vld [vmem:[#allocation6] sm:$0xff]
        %v450 = vld [vmem:[#allocation6 + $0x8] sm:$0xff]
        %v451 = vadd.f32 %v419, %v447
        %v452 = vadd.f32 %v422, %v448
        %v453 = vadd.f32 %v419, %v449
        %v454 = vadd.f32 %v422, %v450
        %vm455 = vcmask 130048
        %v456 = vsel %vm455, %v451, -inf
        %457 = vmax.xlane.f32.xlu0 %v456
        %v458 = vpop.xlane.xlu0 %457
        %v459 = vsel %vm455, %v452, -inf
        %460 = vmax.xlane.f32.xlu0 %v459
        %v461 = vpop.xlane.xlu0 %460
        %v462 = vsel %vm455, %v453, -inf
        %463 = vmax.xlane.f32.xlu0 %v462
        %v464 = vpop.xlane.xlu0 %463
        %v465 = vsel %vm455, %v454, -inf
        %466 = vmax.xlane.f32.xlu0 %v465
        %v467 = vpop.xlane.xlu0 %466
        %v468 = vmax.f32 %v458, %v464
        %v469 = vmax.f32 %v461, %v467
        %v470 = vsub.f32 %v451, %v468
        %v471 = vsub.f32 %v452, %v469
        %v472 = vmul.f32 %v470, 1.442695
        %v473 = vpow.pop %v472
        %v474 = vmul.f32 %v471, 1.442695
        %v475 = vpow.pop %v474
        %v476 = vsel %vm455, %v473, 0.0
        %477 = vadd.xlane.f32.xlu0 %v476
        %v478 = vpop.xlane.xlu0 %477
        %v479 = vsel %vm455, %v475, 0.0
        %480 = vadd.xlane.f32.xlu0 %v479
        %v481 = vpop.xlane.xlu0 %480
        %v482 = vsub.f32 %v453, %v468
        %v483 = vsub.f32 %v454, %v469
        %v484 = vmul.f32 %v482, 1.442695
        %v485 = vpow.pop %v484
        %v486 = vmul.f32 %v483, 1.442695
        %v487 = vpow.pop %v486
        %v488 = vsel %vm455, %v485, 0.0
        %489 = vadd.xlane.f32.xlu0 %v488
        %v490 = vpop.xlane.xlu0 %489
        %v491 = vsel %vm455, %v487, 0.0
        %492 = vadd.xlane.f32.xlu0 %v491
        %v493 = vpop.xlane.xlu0 %492
        %v494 = vadd.f32 %v478, %v490
        %v495 = vadd.f32 %v481, %v493
        %v496 = vlog2.pop %v494
        %v497 = vmul.f32 %v496, 0.6931472
        %v498 = vlog2.pop %v495
        %v499 = vmul.f32 %v498, 0.6931472
        %v500 = vlog2.pop %v478
        %v501 = vmul.f32 %v500, 0.6931472
        %v502 = vlog2.pop %v481
        %v503 = vmul.f32 %v502, 0.6931472
        %v504 = vsub.f32 %v497, %v501
        %v505 = vsub.f32 %v499, %v503
        %vm506 = vcmp.ge.f32.partialorder %v458, %v464
        %vm507 = vcmp.ge.f32.partialorder %v461, %v467
        %v508 = vsel %vm506, 1, 0
        %v509 = vsel %vm507, 1, 0
        %v510 = vcvt.s32.f32 %v508
        %v511 = vcvt.s32.f32 %v509
        %v512 = vadd.f32 %v442, %v447
        %v513 = vadd.f32 %v445, %v448
        %v514 = vadd.f32 %v442, %v449
        %v515 = vadd.f32 %v445, %v450
        %v516 = vsel %vm455, %v512, -inf
        %517 = vmax.xlane.f32.xlu0 %v516
        %v518 = vpop.xlane.xlu0 %517
        %v519 = vsel %vm455, %v513, -inf
        %520 = vmax.xlane.f32.xlu0 %v519
        %v521 = vpop.xlane.xlu0 %520
        %v522 = vsel %vm455, %v514, -inf
        %523 = vmax.xlane.f32.xlu0 %v522
        %v524 = vpop.xlane.xlu0 %523
        %v525 = vsel %vm455, %v515, -inf
        %526 = vmax.xlane.f32.xlu0 %v525
        %v527 = vpop.xlane.xlu0 %526
        %v528 = vmax.f32 %v518, %v524
        %v529 = vmax.f32 %v521, %v527
        %v530 = vsub.f32 %v512, %v528
        %v531 = vsub.f32 %v513, %v529
        %v532 = vmul.f32 %v530, 1.442695
        %v533 = vpow.pop %v532
        %v534 = vmul.f32 %v531, 1.442695
        %v535 = vpow.pop %v534
        %v536 = vsel %vm455, %v533, 0.0
        %537 = vadd.xlane.f32.xlu0 %v536
        %v538 = vpop.xlane.xlu0 %537
        %v539 = vsel %vm455, %v535, 0.0
        %540 = vadd.xlane.f32.xlu0 %v539
        %v541 = vpop.xlane.xlu0 %540
        %v542 = vsub.f32 %v514, %v528
        %v543 = vsub.f32 %v515, %v529
        %v544 = vmul.f32 %v542, 1.442695
        %v545 = vpow.pop %v544
        %v546 = vmul.f32 %v543, 1.442695
        %v547 = vpow.pop %v546
        %v548 = vsel %vm455, %v545, 0.0
        %549 = vadd.xlane.f32.xlu0 %v548
        %v550 = vpop.xlane.xlu0 %549
        %v551 = vsel %vm455, %v547, 0.0
        %552 = vadd.xlane.f32.xlu0 %v551
        %v553 = vpop.xlane.xlu0 %552
        %v554 = vadd.f32 %v538, %v550
        %v555 = vadd.f32 %v541, %v553
        %v556 = vlog2.pop %v554
        %v557 = vmul.f32 %v556, 0.6931472
        %v558 = vlog2.pop %v555
        %v559 = vmul.f32 %v558, 0.6931472
        %v560 = vlog2.pop %v538
        %v561 = vmul.f32 %v560, 0.6931472
        %v562 = vlog2.pop %v541
        %v563 = vmul.f32 %v562, 0.6931472
        %v564 = vsub.f32 %v557, %v561
        %v565 = vsub.f32 %v559, %v563
        %vm566 = vcmp.ge.f32.partialorder %v518, %v524
        %vm567 = vcmp.ge.f32.partialorder %v521, %v527
        %v568 = vsel %vm566, 1, 0
        %v569 = vsel %vm567, 1, 0
        %v570 = vcvt.s32.f32 %v568
        %v571 = vcvt.s32.f32 %v569
        %v572 = vadd.f32 %v504, %v564
        %v573 = vadd.f32 %v505, %v565
        %v576 = vlaneseq
        %v577 = vand.u32 %v576, 127
        %v578 = vperm.slane %v572, %v577
        %v579 = vadd.s32 %v577, 4294967288
        %v580 = vperm.slane %v573, %v579
        %vm581 = vcmask 130112
        %v582 = vsel %vm581, %v580, %v578
        %vm584 = vcmask 122880
        %585 = vst.msk [vmem:[%s315] sm:$0x1] %vm584, %v582
        %v586 = vadd.f32 %v510, %v570
        %v587 = vadd.f32 %v511, %v571
        %v590 = vperm.slane %v586, %v577
        %v591 = vperm.slane %v587, %v579
        %v592 = vsel %vm581, %v591, %v590
        %s594 = scalar_lea.vmem %s315, 1 [#allocation10]
        %595 = vst.msk [vmem:[%s594] sm:$0x1] %vm584, %v592
        %s596 = sand.u32 %s145, 1
        %s597 = scalar_lea.sflag [#allocation5], %s596
        %s598 = sand.u32 %s145, 1
        %s599 = smul.addr %s598, 2
        %s600 = scalar_lea.vmem [#allocation10], %s599
        // Predicated region
        $region57: #{tpu_custom_call.1} parent=39 // pred_check
          %p601 = pneg %p155
        $region58: #{tpu_custom_call.1} parent=39 // pred_check_branch
          %603 = sbr.rel (%p601) target = $region60
        $region59: #{tpu_custom_call.1} parent=39 // pred_region
          %605 = vsyncadd %s597, 0
          %s606 = smul.addr %s22, 2
          %s607 = scalar_lea.hbm %s5, %s606
          %s608 = sshll.u32 %s600, 4
          %s609 = int_to_ptr.vmem [resolvable:$true] %s608
          %s610 = sshll.u32 %s607, 4
          %s611 = int_to_ptr.hbm [resolvable:$true] %s610
          %616 = dma.vmem_to_hbm [thread:$0]  %s609, 32, %s611, %s597, 16, 16, 1
        $region60: #{tpu_custom_call.1} parent=39 // pred_fallthru
          _
      $region40: #{tpu_custom_call.1} parent=5 // pred_fallthru
        _
      %p617 = scmp.le.s32.totalorder 2, %s17
      // Predicated region
      $region61: #{tpu_custom_call.1} parent=5 // pred_check
        %p618 = pneg %p617
      $region62: #{tpu_custom_call.1} parent=5 // pred_check_branch
        %620 = sbr.rel (%p618) target = $region64
      $region63: #{tpu_custom_call.1} parent=5 // pred_region
        %s621 = ssub.s32 %s17, 2
        // Predicated region
        $region65: #{tpu_custom_call.1} parent=63 // pred_check
          %p622 = pneg %p161
        $region66: #{tpu_custom_call.1} parent=63 // pred_check_branch
          %624 = sbr.rel (%p622) target = $region68
        $region67: #{tpu_custom_call.1} parent=63 // pred_region
          %s625 = sand.u32 %s146, 1
          %s626 = scalar_lea.sflag [#allocation5], %s625
          %s627 = sand.u32 %s146, 1
          %s628 = smul.addr %s627, 2
          %s629 = scalar_lea.vmem [#allocation10], %s628
          %631 = dma.done %s626, 32
        $region68: #{tpu_custom_call.1} parent=63 // pred_fallthru
          _
      $region64: #{tpu_custom_call.1} parent=5 // pred_fallthru
        _
    $region6: #{tpu_custom_call.1} parent=1 // loop_footer
      %s21 = sadd.s32 1, %s17
    $region7: #{tpu_custom_call.1} parent=1 // loop_footer_branch
      %16 = sbr.rel target = $region3
    $region8: #{tpu_custom_call.1} parent=1 // loop_exit
      _
    %632 = vsyncpa [#allocation4], 1
    %s633 = scalar_lea.sflag [#allocation4], 1
    %634 = vsyncpa %s633, 1
    %635 = vsyncpa [#allocation7], 1
    %636 = vsyncpa [#allocation5], 1
    %s637 = scalar_lea.sflag [#allocation5], 1
    %638 = vsyncpa %s637, 1

</llo_original>
